<compile_context>
chip_gen: v7x
topology: tpu7x:2x2x1
jax: 0.10.0
libtpu: 0.0.40
codegen_flags: <defaults>
</compile_context>

<pallas_src>
import functools

import jax
import jax.numpy as jnp
from jax.experimental import pallas as pl
from jax.experimental.pallas import tpu as pltpu

LANE = 128         # TPU lane width (minor dim)
SUBLANE = 8        # f32 sublane count
HID = 128          # fused hidden width (actor_h || critic_h, zero-padded to 128)
OUT_ROWS = 8       # fused output rows (na mean rows + 1 value row, padded to 8)
MAX_TILE_B = 1024  # max batch tile (lanes) per grid step

# Row offsets inside the packed weight slab (all static Python ints).
W1_R0 = 0                       # [0,   128): transposed layer-1 weights
W2_R0 = HID                     # [128, 256): transposed layer-2 weights (block-diag)
W3_R0 = 2 * HID                 # [256, 264): transposed layer-3 weights (8 rows)
BIAS_R0 = 2 * HID + OUT_ROWS    # [264, 392): bias / epilogue columns (lanes 0..4)
N_SLAB_ROWS = BIAS_R0 + HID     # 392 rows total (multiple of 8)


def _round_up(x, m):
    return (x + m - 1) // m * m


def _fused_mlp_kernel(obs_t_ref, w_ref, out_ref, *, in_dim_p):
    """Fused actor+critic MLP, feature-major (transposed) orientation.

    obs_t_ref : [in_dim_p, tile_b]  transposed observations (batch on lanes)
    w_ref     : [N_SLAB_ROWS, 128]  packed weights/biases (see pack_mlp_params)
    out_ref   : [8, tile_b]         rows 0..na-1 = mean, row na = value, rest 0
    """
    x_t = obs_t_ref[...]                                            # [in_dim_p, tb]

    # layer 1: rows [0,A1) = actor h1, [A1,A1+C1) = critic h1, rest exact zeros
    h = jnp.dot(w_ref[W1_R0:W1_R0 + HID, 0:in_dim_p], x_t,
                preferred_element_type=jnp.float32)                 # [128, tb]
    h = jnp.maximum(h + w_ref[BIAS_R0:BIAS_R0 + HID, 0:1], 0.0)

    # layer 2: block-diagonal actor/critic hidden (off-diagonal blocks are 0)
    h = jnp.dot(w_ref[W2_R0:W2_R0 + HID, :], h,
                preferred_element_type=jnp.float32)                 # [128, tb]
    h = jnp.maximum(h + w_ref[BIAS_R0:BIAS_R0 + HID, 1:2], 0.0)

    # layer 3: only the (na + 1) useful outputs, produced directly as rows
    pre = jnp.dot(w_ref[W3_R0:W3_R0 + OUT_ROWS, :], h,
                  preferred_element_type=jnp.float32)               # [8, tb]
    pre = pre + w_ref[BIAS_R0:BIAS_R0 + OUT_ROWS, 2:3]

    mul = w_ref[BIAS_R0:BIAS_R0 + OUT_ROWS, 3:4]    # output_mul on mean rows, else 0
    vsel = w_ref[BIAS_R0:BIAS_R0 + OUT_ROWS, 4:5]   # 1.0 on the value row, else 0
    # mean rows: tanh(pre)*mul ; value row: pre ; padded rows: exact 0
    out_ref[...] = (jnp.tanh(pre) * mul + pre * vsel).astype(out_ref.dtype)


def pack_mlp_params(params, output_mul=None):
    """Host-side, one-time packing of all weights/biases into one VMEM slab."""
    a1w = jnp.asarray(params["actor_hidden_1_w"], jnp.float32)   # [in, A1]
    a2w = jnp.asarray(params["actor_hidden_2_w"], jnp.float32)   # [A1, A2]
    a3w = jnp.asarray(params["actor_output_w"], jnp.float32)     # [A2, na]
    c1w = jnp.asarray(params["critic_hidden_w"], jnp.float32)    # [in, C1]
    c2w = jnp.asarray(params["critic_hidden2_w"], jnp.float32)   # [C1, C1]
    c3w = jnp.asarray(params["critic_output_w"], jnp.float32)    # [C1, 1]
    a1b = jnp.asarray(params["actor_hidden_1_b"], jnp.float32).reshape(-1)
    a2b = jnp.asarray(params["actor_hidden_2_b"], jnp.float32).reshape(-1)
    a3b = jnp.asarray(params["actor_output_b"], jnp.float32).reshape(-1)
    c1b = jnp.asarray(params["critic_hidden_b"], jnp.float32).reshape(-1)
    c2b = jnp.asarray(params["critic_hidden2_b"], jnp.float32).reshape(-1)
    c3b = jnp.asarray(params["critic_output_b"], jnp.float32).reshape(-1)

    in_dim, A1 = a1w.shape
    A2 = a2w.shape[1]
    C1 = c1w.shape[1]
    na = a3w.shape[1]
    in_dim_p = _round_up(in_dim, SUBLANE)
    assert A1 + C1 <= HID and A2 + C1 <= HID and na + 1 <= OUT_ROWS, (
        "fused packing assumes each fused layer fits in 128 hidden units and "
        "na+1 <= 8 output rows")
    assert in_dim_p <= LANE, "fused packing assumes input_dim <= 128"

    # layer-1 weights, transposed: rows = fused hidden units, lanes = input dim
    w1t = jnp.zeros((HID, LANE), jnp.float32)
    w1t = w1t.at[:A1, :in_dim].set(a1w.T)
    w1t = w1t.at[A1:A1 + C1, :in_dim].set(c1w.T)

    # layer-2 weights, transposed block-diagonal (exact zeros off-diagonal)
    w2t = jnp.zeros((HID, LANE), jnp.float32)
    w2t = w2t.at[:A2, :A1].set(a2w.T)
    w2t = w2t.at[A2:A2 + C1, A1:A1 + C1].set(c2w.T)

    # layer-3 weights, transposed & restricted to the na+1 useful outputs
    w3t = jnp.zeros((OUT_ROWS, LANE), jnp.float32)
    w3t = w3t.at[:na, :A2].set(a3w.T)
    w3t = w3t.at[na, A2:A2 + C1].set(c3w[:, 0])

    # bias / epilogue columns: lane 0 = b1, 1 = b2, 2 = b3, 3 = output_mul,
    # lane 4 = value-select (1.0 on the value row)
    if output_mul is None:
        mul = jnp.ones((na,), jnp.float32)
    else:
        mul = jnp.asarray(output_mul, jnp.float32).reshape(-1)
    bcol = jnp.zeros((HID, LANE), jnp.float32)
    bcol = bcol.at[:A1, 0].set(a1b)
    bcol = bcol.at[A1:A1 + C1, 0].set(c1b)
    bcol = bcol.at[:A2, 1].set(a2b)
    bcol = bcol.at[A2:A2 + C1, 1].set(c2b)
    bcol = bcol.at[:na, 2].set(a3b)
    bcol = bcol.at[na, 2].set(c3b[0])
    bcol = bcol.at[:na, 3].set(mul)
    bcol = bcol.at[na, 4].set(1.0)

    wslab = jnp.concatenate([w1t, w2t, w3t, bcol], axis=0)   # [392, 128]
    assert wslab.shape == (N_SLAB_ROWS, LANE)

    return {
        "wslab": wslab,
        "log_std": jnp.asarray(params["log_std"], jnp.float32),
        "in_dim": int(in_dim),
        "in_dim_p": int(in_dim_p),
        "num_actions": int(na),
    }


def mlp_forward_packed(obs, packed):
    """Fused forward. Returns (mean [B,na], log_std [1,na], value [B,1])."""
    in_dim = packed["in_dim"]
    in_dim_p = packed["in_dim_p"]
    na = packed["num_actions"]
    wslab = packed["wslab"]

    B = obs.shape[0]
    b_pad = _round_up(B, LANE)
    # Batch tiling: tiles are multiples of 128 lanes, capped at MAX_TILE_B.
    # When there is more than one lane-tile of work, force >= 2 grid steps so
    # the "parallel" axis can shard across v7x's two TensorCores.
    n_tiles = max(1, -(-b_pad // MAX_TILE_B))
    if b_pad > LANE:
        n_tiles = max(n_tiles, 2)
    tile_b = _round_up(-(-b_pad // n_tiles), LANE)
    b_pad = _round_up(b_pad, tile_b)
    grid_b = b_pad // tile_b

    # Transpose + pad the observations (one small XLA copy, same count as the
    # previous version's pad; the kernel then reads only in_dim_p rows).
    obs_t = jnp.transpose(obs.astype(jnp.float32))                 # [in_dim, B]
    obs_t = jnp.pad(obs_t, ((0, in_dim_p - in_dim), (0, b_pad - B)))

    out_t = pl.pallas_call(
        functools.partial(_fused_mlp_kernel, in_dim_p=in_dim_p),
        out_shape=jax.ShapeDtypeStruct((OUT_ROWS, b_pad), jnp.float32),
        grid=(grid_b,),
        in_specs=[
            pl.BlockSpec((in_dim_p, tile_b), lambda i: (0, i)),
            pl.BlockSpec((wslab.shape[0], LANE), lambda i: (0, 0)),
        ],
        out_specs=pl.BlockSpec((OUT_ROWS, tile_b), lambda i: (0, i)),
        compiler_params=pltpu.CompilerParams(
            dimension_semantics=("parallel",)),
    )(obs_t, wslab)

    # Tiny (<=8 x B) slices; callers that can consume the packed transposed
    # slab directly should use out_t as-is and skip these transposes.
    mean = jnp.transpose(out_t[:na, :B])            # [B, na]
    value = jnp.transpose(out_t[na:na + 1, :B])     # [B, 1]
    return mean, packed["log_std"], value


def mlp_model_continuous_v2_forward(obs, params, output_mul=None):
    """Convenience wrapper: pack (cache this across steps!) + fused forward."""
    packed = pack_mlp_params(params, output_mul)
    return mlp_forward_packed(obs, packed)


def init_params(key, input_dim, actor_h1, actor_h2, critic_h1, num_actions,
                initial_std_const=0.0):
    """uniform(-1/sqrt(fan_in), 1/sqrt(fan_in)) init, matching nn.Linear defaults."""
    def linear(key, fan_in, fan_out):
        kw, kb = jax.random.split(key)
        bound = 1.0 / jnp.sqrt(fan_in)
        w = jax.random.uniform(kw, (fan_in, fan_out), jnp.float32, -bound, bound)
        b = jax.random.uniform(kb, (1, fan_out), jnp.float32, -bound, bound)
        return w, b

    keys = jax.random.split(key, 6)
    aw1, ab1 = linear(keys[0], input_dim, actor_h1)
    aw2, ab2 = linear(keys[1], actor_h1, actor_h2)
    aw3, ab3 = linear(keys[2], actor_h2, num_actions)
    cw1, cb1 = linear(keys[3], input_dim, critic_h1)
    cw2, cb2 = linear(keys[4], critic_h1, critic_h1)
    cw3, cb3 = linear(keys[5], critic_h1, 1)

    return {
        "actor_hidden_1_w": aw1, "actor_hidden_1_b": ab1,
        "actor_hidden_2_w": aw2, "actor_hidden_2_b": ab2,
        "actor_output_w": aw3,   "actor_output_b": ab3,
        "critic_hidden_w": cw1,  "critic_hidden_b": cb1,
        "critic_hidden2_w": cw2, "critic_hidden2_b": cb2,
        "critic_output_w": cw3,  "critic_output_b": cb3,
        "log_std": initial_std_const * jnp.ones((1, num_actions), jnp.float32),
    }


def reference_forward(obs, params, output_mul):
    """Pure-JAX reference of the PyTorch forward (for correctness check)."""
    x = jnp.maximum(obs @ params["actor_hidden_1_w"] + params["actor_hidden_1_b"], 0.0)
    x = jnp.maximum(x @ params["actor_hidden_2_w"] + params["actor_hidden_2_b"], 0.0)
    mean = jnp.tanh(x @ params["actor_output_w"] + params["actor_output_b"]) * output_mul
    v = jnp.maximum(obs @ params["critic_hidden_w"] + params["critic_hidden_b"], 0.0)
    v = jnp.maximum(v @ params["critic_hidden2_w"] + params["critic_hidden2_b"], 0.0)
    value = v @ params["critic_output_w"] + params["critic_output_b"]
    return mean, params["log_std"], value


if __name__ == "__main__":
    # model_config equivalent:
    #   input_dim=16, actor={first_hidden:32, second_hidden:32},
    #   critic={first_hidden:32}, num_actions=4, output_mul=[2,2,2,2],
    #   initial_std_const=0.0
    B, input_dim = 8, 16
    actor_h1, actor_h2 = 32, 32
    critic_h1 = 32
    num_actions = 4

    key = jax.random.PRNGKey(0)
    k_obs, k_params = jax.random.split(key)

    obs = jax.random.normal(k_obs, (B, input_dim), jnp.float32)
    params = init_params(k_params, input_dim, actor_h1, actor_h2, critic_h1,
                         num_actions, initial_std_const=0.0)
    output_mul = 2.0 * jnp.ones((1, num_actions), jnp.float32)

    # Pack once (weights are static across steps), then run the fused kernel.
    packed = pack_mlp_params(params, output_mul)
    mean, log_std, value = mlp_forward_packed(obs, packed)
    jax.block_until_ready((mean, log_std, value))

    # Sanity check vs pure-JAX reference (default matmul precision on both
    # sides; documented tolerance 1e-4).
    ref_mean, ref_log_std, ref_value = reference_forward(obs, params, output_mul)
    assert mean.shape == (B, num_actions)
    assert value.shape == (B, 1)
    assert log_std.shape == (1, num_actions)
    assert jnp.allclose(mean, ref_mean, atol=1e-4, rtol=1e-5)
    assert jnp.allclose(value, ref_value, atol=1e-4, rtol=1e-5)
    assert jnp.allclose(log_std, ref_log_std)

    print("KERNEL_OK")
</pallas_src>

<mosaic_0001>
module attributes {stable_mosaic.version = 11 : i64} {
  func.func @_fused_mlp_kernel(%arg0: i32, %arg1: memref<16x128xf32, #tpu.memory_space<vmem>>, %arg2: memref<392x128xf32, #tpu.memory_space<vmem>>, %arg3: memref<8x128xf32, #tpu.memory_space<vmem>>) attributes {dimension_semantics = [#tpu.dimension_semantics<parallel>], iteration_bounds = array<i64: 1>, scalar_prefetch = 0 : i64, scratch_operands = 0 : i64, tpu.core_type = #tpu.core_type<tc>, window_params = [{transform_indices = @transform_0, window_bounds = array<i64: 16, 128>}, {pipeline_mode = #tpu.pipeline_mode<synchronous>, transform_indices = @transform_1, window_bounds = array<i64: 392, 128>}, {transform_indices = @transform_2, window_bounds = array<i64: 8, 128>}]} {
    %c0 = arith.constant 0 : index
    %c0_0 = arith.constant 0 : index
    %0 = vector.load %arg1[%c0, %c0_0] : memref<16x128xf32, #tpu.memory_space<vmem>>, vector<16x128xf32>
    %c0_1 = arith.constant 0 : index
    %c0_2 = arith.constant 0 : index
    %1 = vector.load %arg2[%c0_1, %c0_2] : memref<392x128xf32, #tpu.memory_space<vmem>>, vector<128x16xf32>
    %cst = arith.constant dense<0.000000e+00> : vector<128x128xf32>
    %2 = tpu.matmul %1, %0, %cst {dimension_numbers = #tpu.dot_dimension_numbers<[1], [0], [0], [1], [0, 0, 1, 1], [], []>} : vector<128x16xf32>, vector<16x128xf32>, vector<128x128xf32> -> vector<128x128xf32>
    %c264 = arith.constant 264 : index
    %c0_3 = arith.constant 0 : index
    %3 = vector.load %arg2[%c264, %c0_3] : memref<392x128xf32, #tpu.memory_space<vmem>>, vector<128x1xf32>
    %4 = vector.broadcast %3 : vector<128x1xf32> to vector<128x128xf32>
    %5 = arith.addf %2, %4 : vector<128x128xf32>
    %cst_4 = arith.constant 0.000000e+00 : f32
    %6 = vector.broadcast %cst_4 : f32 to vector<128x128xf32>
    %7 = arith.maximumf %5, %6 : vector<128x128xf32>
    %c128 = arith.constant 128 : index
    %c0_5 = arith.constant 0 : index
    %8 = vector.load %arg2[%c128, %c0_5] : memref<392x128xf32, #tpu.memory_space<vmem>>, vector<128x128xf32>
    %cst_6 = arith.constant dense<0.000000e+00> : vector<128x128xf32>
    %9 = tpu.matmul %8, %7, %cst_6 {dimension_numbers = #tpu.dot_dimension_numbers<[1], [0], [0], [1], [0, 0, 1, 1], [], []>} : vector<128x128xf32>, vector<128x128xf32>, vector<128x128xf32> -> vector<128x128xf32>
    %c264_7 = arith.constant 264 : index
    %c1 = arith.constant 1 : index
    %10 = vector.load %arg2[%c264_7, %c1] : memref<392x128xf32, #tpu.memory_space<vmem>>, vector<128x1xf32>
    %11 = vector.broadcast %10 : vector<128x1xf32> to vector<128x128xf32>
    %12 = arith.addf %9, %11 : vector<128x128xf32>
    %cst_8 = arith.constant 0.000000e+00 : f32
    %13 = vector.broadcast %cst_8 : f32 to vector<128x128xf32>
    %14 = arith.maximumf %12, %13 : vector<128x128xf32>
    %c256 = arith.constant 256 : index
    %c0_9 = arith.constant 0 : index
    %15 = vector.load %arg2[%c256, %c0_9] : memref<392x128xf32, #tpu.memory_space<vmem>>, vector<8x128xf32>
    %cst_10 = arith.constant dense<0.000000e+00> : vector<8x128xf32>
    %16 = tpu.matmul %15, %14, %cst_10 {dimension_numbers = #tpu.dot_dimension_numbers<[1], [0], [0], [1], [0, 0, 1, 1], [], []>} : vector<8x128xf32>, vector<128x128xf32>, vector<8x128xf32> -> vector<8x128xf32>
    %c264_11 = arith.constant 264 : index
    %c2 = arith.constant 2 : index
    %17 = vector.load %arg2[%c264_11, %c2] : memref<392x128xf32, #tpu.memory_space<vmem>>, vector<8x1xf32>
    %18 = vector.broadcast %17 : vector<8x1xf32> to vector<8x128xf32>
    %19 = arith.addf %16, %18 : vector<8x128xf32>
    %c264_12 = arith.constant 264 : index
    %c3 = arith.constant 3 : index
    %20 = vector.load %arg2[%c264_12, %c3] : memref<392x128xf32, #tpu.memory_space<vmem>>, vector<8x1xf32>
    %c264_13 = arith.constant 264 : index
    %c4 = arith.constant 4 : index
    %21 = vector.load %arg2[%c264_13, %c4] : memref<392x128xf32, #tpu.memory_space<vmem>>, vector<8x1xf32>
    %22 = math.tanh %19 : vector<8x128xf32>
    %23 = vector.broadcast %20 : vector<8x1xf32> to vector<8x128xf32>
    %24 = arith.mulf %22, %23 : vector<8x128xf32>
    %25 = vector.broadcast %21 : vector<8x1xf32> to vector<8x128xf32>
    %26 = arith.mulf %19, %25 : vector<8x128xf32>
    %27 = arith.addf %24, %26 : vector<8x128xf32>
    %c0_14 = arith.constant 0 : index
    %c0_15 = arith.constant 0 : index
    %28 = vector.load %arg3[%c0_14, %c0_15] : memref<8x128xf32, #tpu.memory_space<vmem>>, vector<8x128xf32>
    tpu.vector_store %arg3[%c0_14, %c0_15], %27 {strides = array<i32>} : memref<8x128xf32, #tpu.memory_space<vmem>>, vector<8x128xf32>,
    return
  }
  func.func @transform_0(%arg0: i32) -> (i32, i32) {
    %c0_i32 = arith.constant 0 : i32
    %c0_i32_0 = arith.constant 0 : i32
    return %c0_i32, %arg0 : i32, i32
  }
  func.func @transform_1(%arg0: i32) -> (i32, i32) {
    %c0_i32 = arith.constant 0 : i32
    %c0_i32_0 = arith.constant 0 : i32
    %c0_i32_1 = arith.constant 0 : i32
    return %c0_i32, %c0_i32_0 : i32, i32
  }
  func.func @transform_2(%arg0: i32) -> (i32, i32) {
    %c0_i32 = arith.constant 0 : i32
    %c0_i32_0 = arith.constant 0 : i32
    return %c0_i32, %arg0 : i32, i32
  }
}

</mosaic_0001>

<llo_original>
// kernel: tpu_custom_call.1
$region0: #{tpu_custom_call.1}
  #allocation0 [shape = 'u32[]', space=smem, size = 0x4, offset = 0x4, fixed_abs, tag = 'smem constant byte address 0x4 - core index']
  #allocation1 [shape = 'u32[144,128]{1,0:T(1,128)}', space=vmem, size = 0x12000, scoped, tag = 'internal scratch']
  %s0 = inlined_call_operand.hbm [shape: f32[16,128], index: 0, kind: input, shape index: {}]
  %s1 = inlined_call_operand.hbm [shape: f32[392,128], index: 1, kind: input, shape index: {}]
  %s2 = inlined_call_operand.hbm [shape: f32[8,128], index: 2, kind: output, shape index: {}]
  %s3 = sld [smem:[#allocation0]]
  $region26: #{tpu_custom_call.1} parent=0
    _
  %s5 = ssub.s32 1, %s3
  %s6 = scalar_select 0, %s5, %s3
  $region1: #{tpu_custom_call.1} parent=0
    #allocation2 [shape = 'u8[8192]{0}', space=vmem, size = 0x2000, scoped, tag = 'input window, operand 0, single buffered']
    #allocation3 [shape = 's32[1]{0}', space=sflag, size = 0x4, scoped, tag = 'scoped memory for tpu_custom_call.1']
    #allocation4 [shape = 's32[1]{0}', space=sflag, size = 0x4, scoped, tag = 'scoped memory for tpu_custom_call.1']
    #allocation5 [shape = 'u8[200704]{0}', space=vmem, size = 0x31000, scoped, tag = 'input window, operand 1, single buffered']
    #allocation6 [shape = 's32[1]{0}', space=sflag, size = 0x4, scoped, tag = 'scoped memory for tpu_custom_call.1']
    #allocation7 [shape = 'u8[4096]{0}', space=vmem, size = 0x1000, scoped, tag = 'output window, operand 0, single buffered']
    %7 = vsyncpa [#allocation3], 0
    %8 = vsyncpa [#allocation6], 0
    %9 = vsyncpa [#allocation4], 0
    // Predicated region
    $region2: #{tpu_custom_call.1} parent=1 // pred_check
      _
    $region3: #{tpu_custom_call.1} parent=1 // pred_check_branch
      %11 = sbr.rel (0) target = $region5
    $region4: #{tpu_custom_call.1} parent=1 // pred_region
      %s13 = ssub.s32 256, 256
      %14 = vsyncadd [#allocation3], %s13
      %s15 = sshll.u32 [#allocation2], 4
      %s16 = int_to_ptr.vmem [resolvable:$true] %s15
      %21 = dma.hbm_to_vmem [thread:$0]  %s0, 256, %s16, [#allocation3], 128, 128, 8
    $region5: #{tpu_custom_call.1} parent=1 // pred_fallthru
      _
    // Predicated region
    $region6: #{tpu_custom_call.1} parent=1 // pred_check
      _
    $region7: #{tpu_custom_call.1} parent=1 // pred_check_branch
      %23 = sbr.rel (0) target = $region9
    $region8: #{tpu_custom_call.1} parent=1 // pred_region
      %s25 = ssub.s32 6272, 6272
      %26 = vsyncadd [#allocation6], %s25
      %s27 = sshll.u32 [#allocation5], 4
      %s28 = int_to_ptr.vmem [resolvable:$true] %s27
      %33 = dma.hbm_to_vmem [thread:$0]  %s1, 6272, %s28, [#allocation6], 128, 128, 8
    $region9: #{tpu_custom_call.1} parent=1 // pred_fallthru
      _
    // Predicated region
    $region10: #{tpu_custom_call.1} parent=1 // pred_check
      _
    $region11: #{tpu_custom_call.1} parent=1 // pred_check_branch
      %35 = sbr.rel (0) target = $region13
    $region12: #{tpu_custom_call.1} parent=1 // pred_region
      %36 = dma.done [#allocation3], 256
    $region13: #{tpu_custom_call.1} parent=1 // pred_fallthru
      _
    // Predicated region
    $region14: #{tpu_custom_call.1} parent=1 // pred_check
      _
    $region15: #{tpu_custom_call.1} parent=1 // pred_check_branch
      %38 = sbr.rel (0) target = $region17
    $region16: #{tpu_custom_call.1} parent=1 // pred_region
      %39 = dma.done [#allocation6], 6272
    $region17: #{tpu_custom_call.1} parent=1 // pred_fallthru
      _
    %v40 = vld [vmem:[#allocation2] sm:$0xff]
    %v41 = vld [vmem:[#allocation2 + $0x8] sm:$0xff]
    %v42 = vld [vmem:[#allocation5] sm:$0xff]
    %v43 = vld [vmem:[#allocation5 + $0x8] sm:$0xff]
    %v44 = vld [vmem:[#allocation5 + $0x10] sm:$0xff]
    %v45 = vld [vmem:[#allocation5 + $0x18] sm:$0xff]
    %v46 = vld [vmem:[#allocation5 + $0x20] sm:$0xff]
    %v47 = vld [vmem:[#allocation5 + $0x28] sm:$0xff]
    %v48 = vld [vmem:[#allocation5 + $0x30] sm:$0xff]
    %v49 = vld [vmem:[#allocation5 + $0x38] sm:$0xff]
    %v50 = vld [vmem:[#allocation5 + $0x40] sm:$0xff]
    %v51 = vld [vmem:[#allocation5 + $0x48] sm:$0xff]
    %v52 = vld [vmem:[#allocation5 + $0x50] sm:$0xff]
    %v53 = vld [vmem:[#allocation5 + $0x58] sm:$0xff]
    %v54 = vld [vmem:[#allocation5 + $0x60] sm:$0xff]
    %v55 = vld [vmem:[#allocation5 + $0x68] sm:$0xff]
    %v56 = vld [vmem:[#allocation5 + $0x70] sm:$0xff]
    %v57 = vld [vmem:[#allocation5 + $0x78] sm:$0xff]
    %v58 = vld [vmem:[#allocation5 + $0x108] sm:$0xff]
    %v59 = vld [vmem:[#allocation5 + $0x110] sm:$0xff]
    %v60 = vld [vmem:[#allocation5 + $0x118] sm:$0xff]
    %v61 = vld [vmem:[#allocation5 + $0x120] sm:$0xff]
    %v62 = vld [vmem:[#allocation5 + $0x128] sm:$0xff]
    %v63 = vld [vmem:[#allocation5 + $0x130] sm:$0xff]
    %v64 = vld [vmem:[#allocation5 + $0x138] sm:$0xff]
    %v65 = vld [vmem:[#allocation5 + $0x140] sm:$0xff]
    %v66 = vld [vmem:[#allocation5 + $0x148] sm:$0xff]
    %v67 = vld [vmem:[#allocation5 + $0x150] sm:$0xff]
    %v68 = vld [vmem:[#allocation5 + $0x158] sm:$0xff]
    %v69 = vld [vmem:[#allocation5 + $0x160] sm:$0xff]
    %v70 = vld [vmem:[#allocation5 + $0x168] sm:$0xff]
    %v71 = vld [vmem:[#allocation5 + $0x170] sm:$0xff]
    %v72 = vld [vmem:[#allocation5 + $0x178] sm:$0xff]
    %v73 = vld [vmem:[#allocation5 + $0x180] sm:$0xff]
    %75 = vset.pattern.permute.xlu0 0
    %76 = vperm.xlu0 %75, %v58
    %v77 = vpop.permute.xlu0 %76
    %80 = vset.pattern.permute.xlu0 0
    %81 = vperm.xlu0 %80, %v59
    %v82 = vpop.permute.xlu0 %81
    %85 = vset.pattern.permute.xlu0 0
    %86 = vperm.xlu0 %85, %v60
    %v87 = vpop.permute.xlu0 %86
    %90 = vset.pattern.permute.xlu0 0
    %91 = vperm.xlu0 %90, %v61
    %v92 = vpop.permute.xlu0 %91
    %95 = vset.pattern.permute.xlu0 0
    %96 = vperm.xlu0 %95, %v62
    %v97 = vpop.permute.xlu0 %96
    %100 = vset.pattern.permute.xlu0 0
    %101 = vperm.xlu0 %100, %v63
    %v102 = vpop.permute.xlu0 %101
    %105 = vset.pattern.permute.xlu0 0
    %106 = vperm.xlu0 %105, %v64
    %v107 = vpop.permute.xlu0 %106
    %110 = vset.pattern.permute.xlu0 0
    %111 = vperm.xlu0 %110, %v65
    %v112 = vpop.permute.xlu0 %111
    %115 = vset.pattern.permute.xlu0 0
    %116 = vperm.xlu0 %115, %v66
    %v117 = vpop.permute.xlu0 %116
    %120 = vset.pattern.permute.xlu0 0
    %121 = vperm.xlu0 %120, %v67
    %v122 = vpop.permute.xlu0 %121
    %125 = vset.pattern.permute.xlu0 0
    %126 = vperm.xlu0 %125, %v68
    %v127 = vpop.permute.xlu0 %126
    %130 = vset.pattern.permute.xlu0 0
    %131 = vperm.xlu0 %130, %v69
    %v132 = vpop.permute.xlu0 %131
    %135 = vset.pattern.permute.xlu0 0
    %136 = vperm.xlu0 %135, %v70
    %v137 = vpop.permute.xlu0 %136
    %140 = vset.pattern.permute.xlu0 0
    %141 = vperm.xlu0 %140, %v71
    %v142 = vpop.permute.xlu0 %141
    %145 = vset.pattern.permute.xlu0 0
    %146 = vperm.xlu0 %145, %v72
    %v147 = vpop.permute.xlu0 %146
    %150 = vset.pattern.permute.xlu0 0
    %151 = vperm.xlu0 %150, %v73
    %v152 = vpop.permute.xlu0 %151
    %vm154 = vcmask 130048
    %v156 = vsel %vm154, %v42, 0
    %v159 = vsel %vm154, %v43, 0
    %v162 = vsel %vm154, %v44, 0
    %v165 = vsel %vm154, %v45, 0
    %v168 = vsel %vm154, %v46, 0
    %v171 = vsel %vm154, %v47, 0
    %v174 = vsel %vm154, %v48, 0
    %v177 = vsel %vm154, %v49, 0
    %v180 = vsel %vm154, %v50, 0
    %v183 = vsel %vm154, %v51, 0
    %v186 = vsel %vm154, %v52, 0
    %v189 = vsel %vm154, %v53, 0
    %v192 = vsel %vm154, %v54, 0
    %v195 = vsel %vm154, %v55, 0
    %v198 = vsel %vm154, %v56, 0
    %v201 = vsel %vm154, %v57, 0
    %203 = vmatprep.subr.mxu0 0.0
    %204 = vmatpush1.msra.mxu0 %v40
    %205 = vmatprep.subr.mxu0 0.0
    %206 = vmatpush1.msra.mxu0 %v41
    %207 = vmatprep.subr.mxu0 0.0
    %208 = vmatpush1.msra.mxu0 0.0
    %209 = vmatprep.subr.mxu0 0.0
    %210 = vmatpush1.msra.mxu0 0.0
    %211 = vmatprep.subr.mxu0 0.0
    %212 = vmatpush1.msra.mxu0 0.0
    %213 = vmatprep.subr.mxu0 0.0
    %214 = vmatpush1.msra.mxu0 0.0
    %215 = vmatprep.subr.mxu0 0.0
    %216 = vmatpush1.msra.mxu0 0.0
    %217 = vmatprep.subr.mxu0 0.0
    %218 = vmatpush1.msra.mxu0 0.0
    %219 = vmatprep.subr.mxu0 0.0
    %220 = vmatpush1.msra.mxu0 0.0
    %221 = vmatprep.subr.mxu0 0.0
    %222 = vmatpush1.msra.mxu0 0.0
    %223 = vmatprep.subr.mxu0 0.0
    %224 = vmatpush1.msra.mxu0 0.0
    %225 = vmatprep.subr.mxu0 0.0
    %226 = vmatpush1.msra.mxu0 0.0
    %227 = vmatprep.subr.mxu0 0.0
    %228 = vmatpush1.msra.mxu0 0.0
    %229 = vmatprep.subr.mxu0 0.0
    %230 = vmatpush1.msra.mxu0 0.0
    %231 = vmatprep.subr.mxu0 0.0
    %232 = vmatpush1.msra.mxu0 0.0
    %233 = vmatprep.subr.mxu0 0.0
    %234 = vmatpush1.msra.mxu0 0.0
    %235 = vmatprep.subr.mxu0 0.0
    %236 = vmatpush1.msra.mxu0 0.0
    %237 = vmatprep.subr.mxu0 0.0
    %238 = vmatpush1.msra.mxu0 0.0
    %239 = vmatprep.subr.mxu0 0.0
    %240 = vmatpush1.msra.mxu0 0.0
    %241 = vmatprep.subr.mxu0 0.0
    %242 = vmatpush1.msra.mxu0 0.0
    %243 = vmatprep.subr.mxu0 0.0
    %244 = vmatpush1.msra.mxu0 0.0
    %245 = vmatprep.subr.mxu0 0.0
    %246 = vmatpush1.msra.mxu0 0.0
    %247 = vmatprep.subr.mxu0 0.0
    %248 = vmatpush1.msra.mxu0 0.0
    %249 = vmatprep.subr.mxu0 0.0
    %250 = vmatpush1.msra.mxu0 0.0
    %251 = vmatprep.subr.mxu0 0.0
    %252 = vmatpush1.msra.mxu0 0.0
    %253 = vmatprep.subr.mxu0 0.0
    %254 = vmatpush1.msra.mxu0 0.0
    %255 = vmatprep.subr.mxu0 0.0
    %256 = vmatpush1.msra.mxu0 0.0
    %257 = vmatprep.subr.mxu0 0.0
    %258 = vmatpush1.msra.mxu0 0.0
    %259 = vmatprep.subr.mxu0 0.0
    %260 = vmatpush1.msra.mxu0 0.0
    %261 = vmatprep.subr.mxu0 0.0
    %262 = vmatpush1.msra.mxu0 0.0
    %263 = vmatprep.subr.mxu0 0.0
    %264 = vmatpush1.msra.mxu0 0.0
    %265 = vmatprep.subr.mxu0 0.0
    %266 = vmatpush1.msra.mxu0 0.0
    %267 = vmatprep.mubr.f32.mxu0 0.0
    %268 = vmatmul.mubr.f32.gmra.mrb[0].mxu0 %v156
    %v269 = vpop.f32.mrb[0].mxu0
    %v270 = vadd.f32 %v77, %v269
    %v271 = vpop.f32.mrb[0].mxu0
    %272 = vmatprep.mubr.f32.mxu0 0.0
    %273 = vmatmul.mubr.f32.gmra.mrb[0].mxu0 %v159
    %v274 = vpop.f32.mrb[0].mxu0
    %v275 = vadd.f32 %v82, %v274
    %v276 = vpop.f32.mrb[0].mxu0
    %277 = vmatprep.mubr.f32.mxu0 0.0
    %278 = vmatmul.mubr.f32.gmra.mrb[0].mxu0 %v162
    %v279 = vpop.f32.mrb[0].mxu0
    %v280 = vadd.f32 %v87, %v279
    %v281 = vpop.f32.mrb[0].mxu0
    %282 = vmatprep.mubr.f32.mxu0 0.0
    %283 = vmatmul.mubr.f32.gmra.mrb[0].mxu0 %v165
    %v284 = vpop.f32.mrb[0].mxu0
    %v285 = vadd.f32 %v92, %v284
    %v286 = vpop.f32.mrb[0].mxu0
    %287 = vmatprep.mubr.f32.mxu0 0.0
    %288 = vmatmul.mubr.f32.gmra.mrb[0].mxu0 %v168
    %v289 = vpop.f32.mrb[0].mxu0
    %v290 = vadd.f32 %v97, %v289
    %v291 = vpop.f32.mrb[0].mxu0
    %292 = vmatprep.mubr.f32.mxu0 0.0
    %293 = vmatmul.mubr.f32.gmra.mrb[0].mxu0 %v171
    %v294 = vpop.f32.mrb[0].mxu0
    %v295 = vadd.f32 %v102, %v294
    %v296 = vpop.f32.mrb[0].mxu0
    %297 = vmatprep.mubr.f32.mxu0 0.0
    %298 = vmatmul.mubr.f32.gmra.mrb[0].mxu0 %v174
    %v299 = vpop.f32.mrb[0].mxu0
    %v300 = vadd.f32 %v107, %v299
    %v301 = vpop.f32.mrb[0].mxu0
    %302 = vmatprep.mubr.f32.mxu0 0.0
    %303 = vmatmul.mubr.f32.gmra.mrb[0].mxu0 %v177
    %v304 = vpop.f32.mrb[0].mxu0
    %v305 = vadd.f32 %v112, %v304
    %v306 = vpop.f32.mrb[0].mxu0
    %307 = vmatprep.mubr.f32.mxu0 0.0
    %308 = vmatmul.mubr.f32.gmra.mrb[0].mxu0 %v180
    %v309 = vpop.f32.mrb[0].mxu0
    %v310 = vadd.f32 %v117, %v309
    %v311 = vpop.f32.mrb[0].mxu0
    %312 = vmatprep.mubr.f32.mxu0 0.0
    %313 = vmatmul.mubr.f32.gmra.mrb[0].mxu0 %v183
    %v314 = vpop.f32.mrb[0].mxu0
    %v315 = vadd.f32 %v122, %v314
    %v316 = vpop.f32.mrb[0].mxu0
    %317 = vmatprep.mubr.f32.mxu0 0.0
    %318 = vmatmul.mubr.f32.gmra.mrb[0].mxu0 %v186
    %v319 = vpop.f32.mrb[0].mxu0
    %v320 = vadd.f32 %v127, %v319
    %v321 = vpop.f32.mrb[0].mxu0
    %322 = vmatprep.mubr.f32.mxu0 0.0
    %323 = vmatmul.mubr.f32.gmra.mrb[0].mxu0 %v189
    %v324 = vpop.f32.mrb[0].mxu0
    %v325 = vadd.f32 %v132, %v324
    %v326 = vpop.f32.mrb[0].mxu0
    %327 = vmatprep.mubr.f32.mxu0 0.0
    %328 = vmatmul.mubr.f32.gmra.mrb[0].mxu0 %v192
    %v329 = vpop.f32.mrb[0].mxu0
    %v330 = vadd.f32 %v137, %v329
    %v331 = vpop.f32.mrb[0].mxu0
    %332 = vmatprep.mubr.f32.mxu0 0.0
    %333 = vmatmul.mubr.f32.gmra.mrb[0].mxu0 %v195
    %v334 = vpop.f32.mrb[0].mxu0
    %v335 = vadd.f32 %v142, %v334
    %v336 = vpop.f32.mrb[0].mxu0
    %337 = vmatprep.mubr.f32.mxu0 0.0
    %338 = vmatmul.mubr.f32.gmra.mrb[0].mxu0 %v198
    %v339 = vpop.f32.mrb[0].mxu0
    %v340 = vadd.f32 %v147, %v339
    %v341 = vpop.f32.mrb[0].mxu0
    %342 = vmatprep.mubr.f32.mxu0 0.0
    %343 = vmatmul.mubr.f32.gmra.mrb[0].mxu0 %v201
    %v344 = vpop.f32.mrb[0].mxu0
    %v345 = vadd.f32 %v152, %v344
    %v346 = vpop.f32.mrb[0].mxu0
    %347 = vdwg.mxu0
    %v348 = vmax.f32 %v270, 0.0
    %v349 = vmax.f32 %v275, 0.0
    %v350 = vmax.f32 %v280, 0.0
    %v351 = vmax.f32 %v285, 0.0
    %v352 = vmax.f32 %v290, 0.0
    %v353 = vmax.f32 %v295, 0.0
    %v354 = vmax.f32 %v300, 0.0
    %v355 = vmax.f32 %v305, 0.0
    %v356 = vmax.f32 %v310, 0.0
    %v357 = vmax.f32 %v315, 0.0
    %v358 = vmax.f32 %v320, 0.0
    %v359 = vmax.f32 %v325, 0.0
    %v360 = vmax.f32 %v330, 0.0
    %v361 = vmax.f32 %v335, 0.0
    %v362 = vmax.f32 %v340, 0.0
    %v363 = vmax.f32 %v345, 0.0
    %v364 = vld [vmem:[#allocation5 + $0x80] sm:$0xff]
    %v365 = vld [vmem:[#allocation5 + $0x88] sm:$0xff]
    %v366 = vld [vmem:[#allocation5 + $0x90] sm:$0xff]
    %v367 = vld [vmem:[#allocation5 + $0x98] sm:$0xff]
    %v368 = vld [vmem:[#allocation5 + $0xa0] sm:$0xff]
    %v369 = vld [vmem:[#allocation5 + $0xa8] sm:$0xff]
    %v370 = vld [vmem:[#allocation5 + $0xb0] sm:$0xff]
    %v371 = vld [vmem:[#allocation5 + $0xb8] sm:$0xff]
    %v372 = vld [vmem:[#allocation5 + $0xc0] sm:$0xff]
    %v373 = vld [vmem:[#allocation5 + $0xc8] sm:$0xff]
    %v374 = vld [vmem:[#allocation5 + $0xd0] sm:$0xff]
    %v375 = vld [vmem:[#allocation5 + $0xd8] sm:$0xff]
    %v376 = vld [vmem:[#allocation5 + $0xe0] sm:$0xff]
    %v377 = vld [vmem:[#allocation5 + $0xe8] sm:$0xff]
    %v378 = vld [vmem:[#allocation5 + $0xf0] sm:$0xff]
    %v379 = vld [vmem:[#allocation5 + $0xf8] sm:$0xff]
    %380 = vset.pattern.permute.xlu0 1
    %381 = vperm.xlu0 %380, %v58
    %v382 = vpop.permute.xlu0 %381
    %384 = vset.pattern.permute.xlu0 1
    %385 = vperm.xlu0 %384, %v59
    %v386 = vpop.permute.xlu0 %385
    %388 = vset.pattern.permute.xlu0 1
    %389 = vperm.xlu0 %388, %v60
    %v390 = vpop.permute.xlu0 %389
    %392 = vset.pattern.permute.xlu0 1
    %393 = vperm.xlu0 %392, %v61
    %v394 = vpop.permute.xlu0 %393
    %396 = vset.pattern.permute.xlu0 1
    %397 = vperm.xlu0 %396, %v62
    %v398 = vpop.permute.xlu0 %397
    %400 = vset.pattern.permute.xlu0 1
    %401 = vperm.xlu0 %400, %v63
    %v402 = vpop.permute.xlu0 %401
    %404 = vset.pattern.permute.xlu0 1
    %405 = vperm.xlu0 %404, %v64
    %v406 = vpop.permute.xlu0 %405
    %408 = vset.pattern.permute.xlu0 1
    %409 = vperm.xlu0 %408, %v65
    %v410 = vpop.permute.xlu0 %409
    %412 = vset.pattern.permute.xlu0 1
    %413 = vperm.xlu0 %412, %v66
    %v414 = vpop.permute.xlu0 %413
    %416 = vset.pattern.permute.xlu0 1
    %417 = vperm.xlu0 %416, %v67
    %v418 = vpop.permute.xlu0 %417
    %420 = vset.pattern.permute.xlu0 1
    %421 = vperm.xlu0 %420, %v68
    %v422 = vpop.permute.xlu0 %421
    %424 = vset.pattern.permute.xlu0 1
    %425 = vperm.xlu0 %424, %v69
    %v426 = vpop.permute.xlu0 %425
    %428 = vset.pattern.permute.xlu0 1
    %429 = vperm.xlu0 %428, %v70
    %v430 = vpop.permute.xlu0 %429
    %432 = vset.pattern.permute.xlu0 1
    %433 = vperm.xlu0 %432, %v71
    %v434 = vpop.permute.xlu0 %433
    %436 = vset.pattern.permute.xlu0 1
    %437 = vperm.xlu0 %436, %v72
    %v438 = vpop.permute.xlu0 %437
    %440 = vset.pattern.permute.xlu0 1
    %441 = vperm.xlu0 %440, %v73
    %v442 = vpop.permute.xlu0 %441
    %444 = vmatprep.subr.mxu0 0.0
    %445 = vmatpush1.msra.mxu0 %v348
    %446 = vmatprep.subr.mxu0 0.0
    %447 = vmatpush1.msra.mxu0 %v349
    %448 = vmatprep.subr.mxu0 0.0
    %449 = vmatpush1.msra.mxu0 %v350
    %450 = vmatprep.subr.mxu0 0.0
    %451 = vmatpush1.msra.mxu0 %v351
    %452 = vmatprep.subr.mxu0 0.0
    %453 = vmatpush1.msra.mxu0 %v352
    %454 = vmatprep.subr.mxu0 0.0
    %455 = vmatpush1.msra.mxu0 %v353
    %456 = vmatprep.subr.mxu0 0.0
    %457 = vmatpush1.msra.mxu0 %v354
    %458 = vmatprep.subr.mxu0 0.0
    %459 = vmatpush1.msra.mxu0 %v355
    %460 = vmatprep.subr.mxu0 0.0
    %461 = vmatpush1.msra.mxu0 %v356
    %462 = vmatprep.subr.mxu0 0.0
    %463 = vmatpush1.msra.mxu0 %v357
    %464 = vmatprep.subr.mxu0 0.0
    %465 = vmatpush1.msra.mxu0 %v358
    %466 = vmatprep.subr.mxu0 0.0
    %467 = vmatpush1.msra.mxu0 %v359
    %468 = vmatprep.subr.mxu0 0.0
    %469 = vmatpush1.msra.mxu0 %v360
    %470 = vmatprep.subr.mxu0 0.0
    %471 = vmatpush1.msra.mxu0 %v361
    %472 = vmatprep.subr.mxu0 0.0
    %473 = vmatpush1.msra.mxu0 %v362
    %474 = vmatprep.subr.mxu0 0.0
    %475 = vmatpush1.msra.mxu0 %v363
    %476 = vmatprep.subr.mxu0 0.0
    %477 = vmatpush1.msra.mxu0 0.0
    %478 = vmatprep.subr.mxu0 0.0
    %479 = vmatpush1.msra.mxu0 0.0
    %480 = vmatprep.subr.mxu0 0.0
    %481 = vmatpush1.msra.mxu0 0.0
    %482 = vmatprep.subr.mxu0 0.0
    %483 = vmatpush1.msra.mxu0 0.0
    %484 = vmatprep.subr.mxu0 0.0
    %485 = vmatpush1.msra.mxu0 0.0
    %486 = vmatprep.subr.mxu0 0.0
    %487 = vmatpush1.msra.mxu0 0.0
    %488 = vmatprep.subr.mxu0 0.0
    %489 = vmatpush1.msra.mxu0 0.0
    %490 = vmatprep.subr.mxu0 0.0
    %491 = vmatpush1.msra.mxu0 0.0
    %492 = vmatprep.subr.mxu0 0.0
    %493 = vmatpush1.msra.mxu0 0.0
    %494 = vmatprep.subr.mxu0 0.0
    %495 = vmatpush1.msra.mxu0 0.0
    %496 = vmatprep.subr.mxu0 0.0
    %497 = vmatpush1.msra.mxu0 0.0
    %498 = vmatprep.subr.mxu0 0.0
    %499 = vmatpush1.msra.mxu0 0.0
    %500 = vmatprep.subr.mxu0 0.0
    %501 = vmatpush1.msra.mxu0 0.0
    %502 = vmatprep.subr.mxu0 0.0
    %503 = vmatpush1.msra.mxu0 0.0
    %504 = vmatprep.subr.mxu0 0.0
    %505 = vmatpush1.msra.mxu0 0.0
    %506 = vmatprep.subr.mxu0 0.0
    %507 = vmatpush1.msra.mxu0 0.0
    %508 = vmatprep.mubr.f32.mxu0 0.0
    %509 = vmatmul.mubr.f32.gmra.mrb[0].mxu0 %v364
    %v510 = vpop.f32.mrb[0].mxu0
    %v511 = vadd.f32 %v382, %v510
    %v512 = vpop.f32.mrb[0].mxu0
    %513 = vmatprep.mubr.f32.mxu0 0.0
    %514 = vmatmul.mubr.f32.gmra.mrb[0].mxu0 %v365
    %v515 = vpop.f32.mrb[0].mxu0
    %v516 = vadd.f32 %v386, %v515
    %v517 = vpop.f32.mrb[0].mxu0
    %518 = vmatprep.mubr.f32.mxu0 0.0
    %519 = vmatmul.mubr.f32.gmra.mrb[0].mxu0 %v366
    %v520 = vpop.f32.mrb[0].mxu0
    %v521 = vadd.f32 %v390, %v520
    %v522 = vpop.f32.mrb[0].mxu0
    %523 = vmatprep.mubr.f32.mxu0 0.0
    %524 = vmatmul.mubr.f32.gmra.mrb[0].mxu0 %v367
    %v525 = vpop.f32.mrb[0].mxu0
    %v526 = vadd.f32 %v394, %v525
    %v527 = vpop.f32.mrb[0].mxu0
    %528 = vmatprep.mubr.f32.mxu0 0.0
    %529 = vmatmul.mubr.f32.gmra.mrb[0].mxu0 %v368
    %v530 = vpop.f32.mrb[0].mxu0
    %v531 = vadd.f32 %v398, %v530
    %v532 = vpop.f32.mrb[0].mxu0
    %533 = vmatprep.mubr.f32.mxu0 0.0
    %534 = vmatmul.mubr.f32.gmra.mrb[0].mxu0 %v369
    %v535 = vpop.f32.mrb[0].mxu0
    %v536 = vadd.f32 %v402, %v535
    %v537 = vpop.f32.mrb[0].mxu0
    %538 = vmatprep.mubr.f32.mxu0 0.0
    %539 = vmatmul.mubr.f32.gmra.mrb[0].mxu0 %v370
    %v540 = vpop.f32.mrb[0].mxu0
    %v541 = vadd.f32 %v406, %v540
    %v542 = vpop.f32.mrb[0].mxu0
    %543 = vmatprep.mubr.f32.mxu0 0.0
    %544 = vmatmul.mubr.f32.gmra.mrb[0].mxu0 %v371
    %v545 = vpop.f32.mrb[0].mxu0
    %v546 = vadd.f32 %v410, %v545
    %v547 = vpop.f32.mrb[0].mxu0
    %548 = vmatprep.mubr.f32.mxu0 0.0
    %549 = vmatmul.mubr.f32.gmra.mrb[0].mxu0 %v372
    %v550 = vpop.f32.mrb[0].mxu0
    %v551 = vadd.f32 %v414, %v550
    %v552 = vpop.f32.mrb[0].mxu0
    %553 = vmatprep.mubr.f32.mxu0 0.0
    %554 = vmatmul.mubr.f32.gmra.mrb[0].mxu0 %v373
    %v555 = vpop.f32.mrb[0].mxu0
    %v556 = vadd.f32 %v418, %v555
    %v557 = vpop.f32.mrb[0].mxu0
    %558 = vmatprep.mubr.f32.mxu0 0.0
    %559 = vmatmul.mubr.f32.gmra.mrb[0].mxu0 %v374
    %v560 = vpop.f32.mrb[0].mxu0
    %v561 = vadd.f32 %v422, %v560
    %v562 = vpop.f32.mrb[0].mxu0
    %563 = vmatprep.mubr.f32.mxu0 0.0
    %564 = vmatmul.mubr.f32.gmra.mrb[0].mxu0 %v375
    %v565 = vpop.f32.mrb[0].mxu0
    %v566 = vadd.f32 %v426, %v565
    %v567 = vpop.f32.mrb[0].mxu0
    %568 = vmatprep.mubr.f32.mxu0 0.0
    %569 = vmatmul.mubr.f32.gmra.mrb[0].mxu0 %v376
    %v570 = vpop.f32.mrb[0].mxu0
    %v571 = vadd.f32 %v430, %v570
    %v572 = vpop.f32.mrb[0].mxu0
    %573 = vmatprep.mubr.f32.mxu0 0.0
    %574 = vmatmul.mubr.f32.gmra.mrb[0].mxu0 %v377
    %v575 = vpop.f32.mrb[0].mxu0
    %v576 = vadd.f32 %v434, %v575
    %v577 = vpop.f32.mrb[0].mxu0
    %578 = vmatprep.mubr.f32.mxu0 0.0
    %579 = vmatmul.mubr.f32.gmra.mrb[0].mxu0 %v378
    %v580 = vpop.f32.mrb[0].mxu0
    %v581 = vadd.f32 %v438, %v580
    %v582 = vpop.f32.mrb[0].mxu0
    %583 = vmatprep.mubr.f32.mxu0 0.0
    %584 = vmatmul.mubr.f32.gmra.mrb[0].mxu0 %v379
    %v585 = vpop.f32.mrb[0].mxu0
    %v586 = vadd.f32 %v442, %v585
    %v587 = vpop.f32.mrb[0].mxu0
    %588 = vdwg.mxu0
    %v589 = vmax.f32 %v511, 0.0
    %v590 = vmax.f32 %v516, 0.0
    %v591 = vmax.f32 %v521, 0.0
    %v592 = vmax.f32 %v526, 0.0
    %v593 = vmax.f32 %v531, 0.0
    %v594 = vmax.f32 %v536, 0.0
    %v595 = vmax.f32 %v541, 0.0
    %v596 = vmax.f32 %v546, 0.0
    %v597 = vmax.f32 %v551, 0.0
    %v598 = vmax.f32 %v556, 0.0
    %v599 = vmax.f32 %v561, 0.0
    %v600 = vmax.f32 %v566, 0.0
    %v601 = vmax.f32 %v571, 0.0
    %v602 = vmax.f32 %v576, 0.0
    %v603 = vmax.f32 %v581, 0.0
    %v604 = vmax.f32 %v586, 0.0
    %v605 = vld [vmem:[#allocation5 + $0x100] sm:$0xff]
    %v606 = vld [vmem:[#allocation5 + $0x108] sm:$0xff]
    %608 = vset.pattern.permute.xlu0 2
    %609 = vperm.xlu0 %608, %v606
    %v610 = vpop.permute.xlu0 %609
    %612 = vmatprep.subr.mxu0 0.0
    %613 = vmatpush1.msra.mxu0 %v589
    %614 = vmatprep.subr.mxu0 0.0
    %615 = vmatpush1.msra.mxu0 %v590
    %616 = vmatprep.subr.mxu0 0.0
    %617 = vmatpush1.msra.mxu0 %v591
    %618 = vmatprep.subr.mxu0 0.0
    %619 = vmatpush1.msra.mxu0 %v592
    %620 = vmatprep.subr.mxu0 0.0
    %621 = vmatpush1.msra.mxu0 %v593
    %622 = vmatprep.subr.mxu0 0.0
    %623 = vmatpush1.msra.mxu0 %v594
    %624 = vmatprep.subr.mxu0 0.0
    %625 = vmatpush1.msra.mxu0 %v595
    %626 = vmatprep.subr.mxu0 0.0
    %627 = vmatpush1.msra.mxu0 %v596
    %628 = vmatprep.subr.mxu0 0.0
    %629 = vmatpush1.msra.mxu0 %v597
    %630 = vmatprep.subr.mxu0 0.0
    %631 = vmatpush1.msra.mxu0 %v598
    %632 = vmatprep.subr.mxu0 0.0
    %633 = vmatpush1.msra.mxu0 %v599
    %634 = vmatprep.subr.mxu0 0.0
    %635 = vmatpush1.msra.mxu0 %v600
    %636 = vmatprep.subr.mxu0 0.0
    %637 = vmatpush1.msra.mxu0 %v601
    %638 = vmatprep.subr.mxu0 0.0
    %639 = vmatpush1.msra.mxu0 %v602
    %640 = vmatprep.subr.mxu0 0.0
    %641 = vmatpush1.msra.mxu0 %v603
    %642 = vmatprep.subr.mxu0 0.0
    %643 = vmatpush1.msra.mxu0 %v604
    %644 = vmatprep.subr.mxu0 0.0
    %645 = vmatpush1.msra.mxu0 0.0
    %646 = vmatprep.subr.mxu0 0.0
    %647 = vmatpush1.msra.mxu0 0.0
    %648 = vmatprep.subr.mxu0 0.0
    %649 = vmatpush1.msra.mxu0 0.0
    %650 = vmatprep.subr.mxu0 0.0
    %651 = vmatpush1.msra.mxu0 0.0
    %652 = vmatprep.subr.mxu0 0.0
    %653 = vmatpush1.msra.mxu0 0.0
    %654 = vmatprep.subr.mxu0 0.0
    %655 = vmatpush1.msra.mxu0 0.0
    %656 = vmatprep.subr.mxu0 0.0
    %657 = vmatpush1.msra.mxu0 0.0
    %658 = vmatprep.subr.mxu0 0.0
    %659 = vmatpush1.msra.mxu0 0.0
    %660 = vmatprep.subr.mxu0 0.0
    %661 = vmatpush1.msra.mxu0 0.0
    %662 = vmatprep.subr.mxu0 0.0
    %663 = vmatpush1.msra.mxu0 0.0
    %664 = vmatprep.subr.mxu0 0.0
    %665 = vmatpush1.msra.mxu0 0.0
    %666 = vmatprep.subr.mxu0 0.0
    %667 = vmatpush1.msra.mxu0 0.0
    %668 = vmatprep.subr.mxu0 0.0
    %669 = vmatpush1.msra.mxu0 0.0
    %670 = vmatprep.subr.mxu0 0.0
    %671 = vmatpush1.msra.mxu0 0.0
    %672 = vmatprep.subr.mxu0 0.0
    %673 = vmatpush1.msra.mxu0 0.0
    %674 = vmatprep.subr.mxu0 0.0
    %675 = vmatpush1.msra.mxu0 0.0
    %676 = vmatprep.mubr.f32.mxu0 0.0
    %677 = vmatmul.mubr.f32.gmra.mrb[0].mxu0 %v605
    %v678 = vpop.f32.mrb[0].mxu0
    %v679 = vadd.f32 %v610, %v678
    %v680 = vpop.f32.mrb[0].mxu0
    %681 = vdwg.mxu0
    %v682 = vtanh.pop %v679
    %683 = vset.pattern.permute.xlu0 3
    %684 = vperm.xlu0 %683, %v606
    %v685 = vpop.permute.xlu0 %684
    %v687 = vmul.f32 %v682, %v685
    %688 = vset.pattern.permute.xlu0 4
    %689 = vperm.xlu0 %688, %v606
    %v690 = vpop.permute.xlu0 %689
    %v692 = vmul.f32 %v679, %v690
    %v693 = vadd.f32 %v687, %v692
    %694 = vst [vmem:[#allocation7] sm:$0xff] %v693
    // Predicated region
    $region18: #{tpu_custom_call.1} parent=1 // pred_check
      _
    $region19: #{tpu_custom_call.1} parent=1 // pred_check_branch
      %696 = sbr.rel (0) target = $region21
    $region20: #{tpu_custom_call.1} parent=1 // pred_region
      %s698 = ssub.s32 128, 128
      %699 = vsyncadd [#allocation4], %s698
      %s701 = sshll.u32 [#allocation7], 4
      %s702 = int_to_ptr.vmem [resolvable:$true] %s701
      %704 = dma.vmem_to_hbm [thread:$0]  %s702, 128, %s2, [#allocation4]
    $region21: #{tpu_custom_call.1} parent=1 // pred_fallthru
      _
    // Predicated region
    $region22: #{tpu_custom_call.1} parent=1 // pred_check
      _
    $region23: #{tpu_custom_call.1} parent=1 // pred_check_branch
      %706 = sbr.rel (0) target = $region25
    $region24: #{tpu_custom_call.1} parent=1 // pred_region
      %707 = dma.done [#allocation4], 128
    $region25: #{tpu_custom_call.1} parent=1 // pred_fallthru
      _
    %708 = vsyncpa [#allocation3], 1
    %709 = vsyncpa [#allocation6], 1
    %710 = vsyncpa [#allocation4], 1

</llo_original>
